<compile_context>
chip_gen: v6e
topology: v6e:2x2x1
jax: 0.10.0
libtpu: 0.0.40
codegen_flags: <defaults>
</compile_context>

<pallas_src>
import jax
import jax.numpy as jnp
from jax.experimental import pallas as pl
from jax.experimental.pallas import tpu as pltpu


# ----------------------------------------------------------------------------- kernels
def _add_pe_bcast_kernel(x_ref, pe_ref, o_ref):
    # x_ref/o_ref: (St, B, D); pe_ref: (St, 1, D) broadcast over batch, native dtype.
    o_ref[...] = x_ref[...] + pe_ref[...]


def _add_kernel_2d(x_ref, pe_ref, o_ref):
    # Flattened fallback: x_ref/pe_ref/o_ref are (St, B*D); pe already pre-broadcast.
    o_ref[...] = x_ref[...] + pe_ref[...]


# ----------------------------------------------------------------------------- pe buffer
def make_positional_encoding(d_model, max_len=5000, dtype=jnp.float32):
    """Build pe exactly like the PyTorch module: shape (max_len, 1, d_model)."""
    position = jnp.arange(max_len, dtype=jnp.float32)[:, None]                # (L, 1)
    div_term = jnp.exp(
        jnp.arange(0, d_model, 2, dtype=jnp.float32)
        * (-jnp.log(jnp.float32(10000.0)) / d_model)
    )                                                                         # (ceil(D/2),)
    angles = position * div_term                                              # (L, ceil(D/2))
    pe = jnp.zeros((max_len, d_model), dtype=jnp.float32)
    pe = pe.at[:, 0::2].set(jnp.sin(angles))
    pe = pe.at[:, 1::2].set(jnp.cos(angles)[:, : d_model // 2])
    return pe[:, None, :].astype(dtype)                                       # (L, 1, D)


# ----------------------------------------------------------------------------- wrapper
def _vmem_budget_bytes():
    """(per-stream tile budget, physical VMEM capacity) for the current chip."""
    try:
        cap = int(pltpu.get_tpu_info().vmem_capacity_bytes)   # 128 MiB v5e/v6e, 64 MiB v7x
    except Exception:
        cap = 64 << 20                                        # conservative (v7x per-TC)
    budget = min(cap // 4, 32 << 20)                          # leave plenty of headroom
    return budget, cap


def _pick_seq_tile(S, per_row_bytes, budget, x_bytes):
    n_bufs = 2                                                # BlockSpec double buffering
    seq_tile = max(1, budget // (n_bufs * max(1, per_row_bytes)))
    seq_tile = min(seq_tile, S)
    # Guarantee >= 4 programs for big arrays: megacore split on v7x + DMA/compute overlap.
    if x_bytes >= (4 << 20):
        seq_tile = min(seq_tile, pl.cdiv(S, min(4, S)))
    # Keep the leading block dim 8-aligned (or full) so partial blocks stay well formed.
    if seq_tile < S:
        seq_tile = min(S, max(8, (seq_tile // 8) * 8))
    return seq_tile


def positional_encoding_forward(x, pe, *, seq_tile=None, donate_x=False,
                                force_pallas=False, min_pallas_bytes=1 << 20):
    """x: (S, B, D); pe: (max_len, 1, D). Returns x + pe[:S] broadcast over batch."""
    S, B, D = x.shape
    assert S <= pe.shape[0], "sequence length exceeds pe max_len"
    itemsize = x.dtype.itemsize
    x_bytes = S * B * D * itemsize

    # pe in x.dtype: halves pe DMA for bf16, native-dtype add in-kernel.
    if pe.dtype != x.dtype:
        pe = pe.astype(x.dtype)

    # Tiny inputs: the fused XLA add beats kernel launch + single-grid-step overhead.
    if x_bytes < min_pallas_bytes and not force_pallas:
        return x + pe[:S]

    budget, vmem_cap = _vmem_budget_bytes()
    vmem_limit = int(min(vmem_cap, budget + (8 << 20)))
    io_aliases = {0: 0} if donate_x else {}

    sublane_pack = {1: 32, 2: 16, 4: 8}.get(itemsize, 8)
    lane_dense = (D % 128 == 0) and (B % sublane_pack == 0)

    if lane_dense:
        # ---- main path: (St, B, D) tiles, pe (St, 1, D) broadcast in-register -------
        per_row = D * itemsize * (2 * B + 1)                  # x + out + pe per seq row
        st = seq_tile if seq_tile is not None else _pick_seq_tile(S, per_row, budget, x_bytes)
        grid = (pl.cdiv(S, st),)
        cost = pl.CostEstimate(flops=S * B * D, transcendentals=0,
                               bytes_accessed=2 * x_bytes + S * D * itemsize)
        return pl.pallas_call(
            _add_pe_bcast_kernel,
            out_shape=jax.ShapeDtypeStruct(x.shape, x.dtype),
            grid_spec=pl.GridSpec(
                grid=grid,
                in_specs=[
                    pl.BlockSpec((st, B, D), lambda i: (i, 0, 0)),   # x tile
                    pl.BlockSpec((st, 1, D), lambda i: (i, 0, 0)),   # pe tile (full buffer)
                ],
                out_specs=pl.BlockSpec((st, B, D), lambda i: (i, 0, 0)),
            ),
            compiler_params=pltpu.CompilerParams(
                dimension_semantics=("parallel",),
                vmem_limit_bytes=vmem_limit,
            ),
            cost_estimate=cost,
            input_output_aliases=io_aliases,
        )(x, pe)                                              # full pe, no pe[:S] slice

    # ---- fallback: ill-shaped minor dims -> flatten to (S, B*D) for denser vregs ----
    # Only taken for toy / ill-shaped inputs, so materializing pe over batch is cheap.
    F = B * D
    x2 = x.reshape(S, F)
    pe2 = jnp.broadcast_to(pe[:S], (S, B, D)).reshape(S, F)
    per_row = F * itemsize * 3                                # x + out + pe per seq row
    st = seq_tile if seq_tile is not None else _pick_seq_tile(S, per_row, budget, x_bytes)
    grid = (pl.cdiv(S, st),)
    cost = pl.CostEstimate(flops=S * F, transcendentals=0,
                           bytes_accessed=3 * S * F * itemsize)
    out2 = pl.pallas_call(
        _add_kernel_2d,
        out_shape=jax.ShapeDtypeStruct((S, F), x.dtype),
        grid_spec=pl.GridSpec(
            grid=grid,
            in_specs=[
                pl.BlockSpec((st, F), lambda i: (i, 0)),
                pl.BlockSpec((st, F), lambda i: (i, 0)),
            ],
            out_specs=pl.BlockSpec((st, F), lambda i: (i, 0)),
        ),
        compiler_params=pltpu.CompilerParams(
            dimension_semantics=("parallel",),
            vmem_limit_bytes=vmem_limit,
        ),
        cost_estimate=cost,
        input_output_aliases=io_aliases,
    )(x2, pe2)
    return out2.reshape(S, B, D)


def _reference(x, pe):
    return x + pe[: x.shape[0]].astype(x.dtype)


if __name__ == "__main__":
    key = jax.random.PRNGKey(0)
    k0, k1 = jax.random.split(key)

    # 1) Small shape consistent with the module (S, B, D) = (8, 2, 32): exercises the
    #    flattened lane-packed fallback path (B < 8, D % 128 != 0).
    S, B, D = 8, 2, 32
    x = jax.random.normal(k0, (S, B, D), dtype=jnp.float32)
    pe = make_positional_encoding(D, max_len=5000, dtype=x.dtype)
    out = jax.block_until_ready(positional_encoding_forward(x, pe, force_pallas=True))
    assert out.shape == (S, B, D)
    assert jnp.allclose(out, _reference(x, pe), atol=1e-6, rtol=1e-6)

    # 2) Small but lane/sublane-dense shape (B mult of 8, D mult of 128): exercises the
    #    main broadcast-pe 3-D path with the full pe buffer.
    S2, B2, D2 = 64, 8, 128
    x2 = jax.random.normal(k1, (S2, B2, D2), dtype=jnp.float32)
    pe2 = make_positional_encoding(D2, max_len=5000, dtype=x2.dtype)
    out2 = jax.block_until_ready(positional_encoding_forward(x2, pe2, force_pallas=True))
    assert out2.shape == (S2, B2, D2)
    assert jnp.allclose(out2, _reference(x2, pe2), atol=1e-6, rtol=1e-6)

    print("KERNEL_OK")
</pallas_src>

<mosaic_0001>
module attributes {stable_mosaic.version = 11 : i64} {
  func.func @_add_kernel_2d(%arg0: i32, %arg1: memref<8x64xf32, #tpu.memory_space<vmem>>, %arg2: memref<8x64xf32, #tpu.memory_space<vmem>>, %arg3: memref<8x64xf32, #tpu.memory_space<vmem>>) attributes {dimension_semantics = [#tpu.dimension_semantics<parallel>], iteration_bounds = array<i64: 1>, scalar_prefetch = 0 : i64, scratch_operands = 0 : i64, tpu.core_type = #tpu.core_type<tc>, window_params = [{transform_indices = @transform_0, window_bounds = array<i64: 8, 64>}, {transform_indices = @transform_1, window_bounds = array<i64: 8, 64>}, {transform_indices = @transform_2, window_bounds = array<i64: 8, 64>}]} {
    %c0 = arith.constant 0 : index
    %c0_0 = arith.constant 0 : index
    %0 = vector.load %arg1[%c0, %c0_0] : memref<8x64xf32, #tpu.memory_space<vmem>>, vector<8x64xf32>
    %c0_1 = arith.constant 0 : index
    %c0_2 = arith.constant 0 : index
    %1 = vector.load %arg2[%c0_1, %c0_2] : memref<8x64xf32, #tpu.memory_space<vmem>>, vector<8x64xf32>
    %2 = arith.addf %0, %1 : vector<8x64xf32>
    %c0_3 = arith.constant 0 : index
    %c0_4 = arith.constant 0 : index
    %3 = vector.load %arg3[%c0_3, %c0_4] : memref<8x64xf32, #tpu.memory_space<vmem>>, vector<8x64xf32>
    tpu.vector_store %arg3[%c0_3, %c0_4], %2 {strides = array<i32>} : memref<8x64xf32, #tpu.memory_space<vmem>>, vector<8x64xf32>,
    return
  }
  func.func @transform_0(%arg0: i32) -> (i32, i32) {
    %c0_i32 = arith.constant 0 : i32
    %c0_i32_0 = arith.constant 0 : i32
    return %arg0, %c0_i32 : i32, i32
  }
  func.func @transform_1(%arg0: i32) -> (i32, i32) {
    %c0_i32 = arith.constant 0 : i32
    %c0_i32_0 = arith.constant 0 : i32
    return %arg0, %c0_i32 : i32, i32
  }
  func.func @transform_2(%arg0: i32) -> (i32, i32) {
    %c0_i32 = arith.constant 0 : i32
    %c0_i32_0 = arith.constant 0 : i32
    return %arg0, %c0_i32 : i32, i32
  }
}

</mosaic_0001>

<llo_original>
// kernel: tpu_custom_call.1
$region0: #{tpu_custom_call.1}
  #allocation0 [shape = 'u32[]', space=smem, size = 0x4, offset = 0x4, fixed_abs, tag = 'smem constant byte address 0x4 - core index']
  #allocation1 [shape = 'u32[144,128]{1,0:T(1,128)}', space=vmem, size = 0x12000, scoped, tag = 'internal scratch']
  %s0 = inlined_call_operand.hbm [shape: f32[8,64], index: 0, kind: input, shape index: {}]
  %s1 = inlined_call_operand.hbm [shape: f32[8,64], index: 1, kind: input, shape index: {}]
  %s2 = inlined_call_operand.hbm [shape: f32[8,64], index: 2, kind: output, shape index: {}]
  %s3 = sld [smem:[#allocation0]]
  $region26: #{tpu_custom_call.1} parent=0
    _
  %s5 = ssub.s32 1, %s3
  %s6 = scalar_select 0, %s5, %s3
  $region1: #{tpu_custom_call.1} parent=0
    #allocation2 [shape = 'u8[4096]{0}', space=vmem, size = 0x1000, scoped, tag = 'input window, operand 0, single buffered']
    #allocation3 [shape = 's32[1]{0}', space=sflag, size = 0x4, scoped, tag = 'scoped memory for tpu_custom_call.1']
    #allocation4 [shape = 's32[1]{0}', space=sflag, size = 0x4, scoped, tag = 'scoped memory for tpu_custom_call.1']
    #allocation5 [shape = 'u8[4096]{0}', space=vmem, size = 0x1000, scoped, tag = 'input window, operand 1, single buffered']
    #allocation6 [shape = 's32[1]{0}', space=sflag, size = 0x4, scoped, tag = 'scoped memory for tpu_custom_call.1']
    #allocation7 [shape = 'u8[4096]{0}', space=vmem, size = 0x1000, scoped, tag = 'output window, operand 0, single buffered']
    %7 = vsyncpa [#allocation3], 0
    %8 = vsyncpa [#allocation6], 0
    %9 = vsyncpa [#allocation4], 0
    // Predicated region
    $region2: #{tpu_custom_call.1} parent=1 // pred_check
      _
    $region3: #{tpu_custom_call.1} parent=1 // pred_check_branch
      %11 = sbr.rel (0) target = $region5
    $region4: #{tpu_custom_call.1} parent=1 // pred_region
      %s13 = ssub.s32 128, 128
      %14 = vsyncadd [#allocation3], %s13
      %s16 = sshll.u32 [#allocation2], 4
      %s17 = int_to_ptr.vmem [resolvable:$true] %s16
      %19 = dma.hbm_to_vmem [thread:$0]  %s0, 128, %s17, [#allocation3]
    $region5: #{tpu_custom_call.1} parent=1 // pred_fallthru
      _
    // Predicated region
    $region6: #{tpu_custom_call.1} parent=1 // pred_check
      _
    $region7: #{tpu_custom_call.1} parent=1 // pred_check_branch
      %21 = sbr.rel (0) target = $region9
    $region8: #{tpu_custom_call.1} parent=1 // pred_region
      %s23 = ssub.s32 128, 128
      %24 = vsyncadd [#allocation6], %s23
      %s26 = sshll.u32 [#allocation5], 4
      %s27 = int_to_ptr.vmem [resolvable:$true] %s26
      %29 = dma.hbm_to_vmem [thread:$0]  %s1, 128, %s27, [#allocation6]
    $region9: #{tpu_custom_call.1} parent=1 // pred_fallthru
      _
    // Predicated region
    $region10: #{tpu_custom_call.1} parent=1 // pred_check
      _
    $region11: #{tpu_custom_call.1} parent=1 // pred_check_branch
      %31 = sbr.rel (0) target = $region13
    $region12: #{tpu_custom_call.1} parent=1 // pred_region
      %32 = dma.done [#allocation3], 128
    $region13: #{tpu_custom_call.1} parent=1 // pred_fallthru
      _
    // Predicated region
    $region14: #{tpu_custom_call.1} parent=1 // pred_check
      _
    $region15: #{tpu_custom_call.1} parent=1 // pred_check_branch
      %34 = sbr.rel (0) target = $region17
    $region16: #{tpu_custom_call.1} parent=1 // pred_region
      %35 = dma.done [#allocation6], 128
    $region17: #{tpu_custom_call.1} parent=1 // pred_fallthru
      _
    %v36 = vld [vmem:[#allocation2] sm:$0xff]
    %v37 = vld [vmem:[#allocation5] sm:$0xff]
    %v38 = vadd.f32 %v36, %v37
    %vm39 = vcmask 523264
    %40 = vst.msk [vmem:[#allocation7] sm:$0xff] %vm39, %v38
    // Predicated region
    $region18: #{tpu_custom_call.1} parent=1 // pred_check
      _
    $region19: #{tpu_custom_call.1} parent=1 // pred_check_branch
      %42 = sbr.rel (0) target = $region21
    $region20: #{tpu_custom_call.1} parent=1 // pred_region
      %s44 = ssub.s32 128, 128
      %45 = vsyncadd [#allocation4], %s44
      %s47 = sshll.u32 [#allocation7], 4
      %s48 = int_to_ptr.vmem [resolvable:$true] %s47
      %50 = dma.vmem_to_hbm [thread:$0]  %s48, 128, %s2, [#allocation4]
    $region21: #{tpu_custom_call.1} parent=1 // pred_fallthru
      _
    // Predicated region
    $region22: #{tpu_custom_call.1} parent=1 // pred_check
      _
    $region23: #{tpu_custom_call.1} parent=1 // pred_check_branch
      %52 = sbr.rel (0) target = $region25
    $region24: #{tpu_custom_call.1} parent=1 // pred_region
      %53 = dma.done [#allocation4], 128
    $region25: #{tpu_custom_call.1} parent=1 // pred_fallthru
      _
    %54 = vsyncpa [#allocation3], 1
    %55 = vsyncpa [#allocation6], 1
    %56 = vsyncpa [#allocation4], 1

</llo_original>
